<compile_context>
chip_gen: v5e
topology: v5e:2x2
jax: 0.10.0
libtpu: 0.0.40
codegen_flags: <defaults>
</compile_context>

<pallas_src>
import functools

import jax
import jax.numpy as jnp
from jax.experimental import pallas as pl
from jax.experimental.pallas import tpu as pltpu


_LANE = 128
_SUBLANE = 8


def _cdiv(a, b):
    return (a + b - 1) // b


def _round_up(a, b):
    return _cdiv(a, b) * b


def _mn_kernel(x_ref, o_ref, *, eps):
    # Block layout: (bn, C, ...) — reduction axis 1 (channels) is fully block-
    # resident, so every output column is computed from its own complete
    # channel vector and partial / padded blocks are harmless.
    x = x_ref[...].astype(jnp.float32)
    x_min = jnp.min(x, axis=1, keepdims=True)
    x_max = jnp.max(x, axis=1, keepdims=True)
    x_range = jnp.maximum(x_max - x_min, eps)
    # Exact reciprocal (matches the reference to ~1 ulp); only 1/C of the tile
    # goes through the divide, the rest is a broadcast multiply on the VPU.
    inv = 1.0 / x_range
    o_ref[...] = ((x - x_min) * inv).astype(o_ref.dtype)


def _hw_config():
    """Generation-aware (block budget [f32 bytes], vmem limit, single_tc)."""
    try:
        kind = jax.devices()[0].device_kind.lower()
    except Exception:
        kind = ""
    if "v7" in kind:
        # 64 MiB physical VMEM, 2 TensorCores per chip.
        return 4 << 20, 32 << 20, False
    if any(t in kind for t in ("v2", "v3", "v4", "v5", "v6")):
        # 128 MiB physical VMEM.
        single_tc = ("v5e" in kind) or ("v6" in kind) or ("lite" in kind)
        return 8 << 20, 64 << 20, single_tc
    # Unknown hardware -> conservative (v7x-safe) settings.
    return 4 << 20, 32 << 20, False


def _choose_blocks_4d(N, C, S, budget_f32, force_two_steps):
    """Block = (bn, C, ts, 128) for the sublane+lane-dense path."""
    row_bytes = C * _LANE * 4                      # one (C, 1, 128) slab in f32
    ts = max(1, budget_f32 // row_bytes)
    if ts >= S:
        ts = S
        bn = max(1, min(N, budget_f32 // max(1, row_bytes * S)))
    else:
        ts = min(S, max(_SUBLANE, (ts // _SUBLANE) * _SUBLANE))
        bn = 1
    if force_two_steps and _cdiv(N, bn) * _cdiv(S, ts) < 2:
        if N > 1:
            bn = _cdiv(N, 2)
        elif S > _SUBLANE:
            half = _round_up(_cdiv(S, 2), _SUBLANE)
            if half < S:
                ts = half
    return bn, ts


def _choose_blocks_3d(N, C, HW, budget_f32, force_two_steps):
    """Block = (bn, C, tile_hw) for the lane-tiled fallback path."""
    hw_full = _round_up(HW, _LANE)
    col_bytes = C * 4                              # one (C, 1) column in f32
    tile_hw = (budget_f32 // max(1, col_bytes)) // _LANE * _LANE
    tile_hw = max(_LANE, min(hw_full, tile_hw))
    if tile_hw >= hw_full:
        tile_hw = hw_full
        bn = max(1, min(N, budget_f32 // max(1, col_bytes * hw_full)))
    else:
        bn = 1
    if force_two_steps and _cdiv(N, bn) * _cdiv(HW, tile_hw) < 2:
        if N > 1:
            bn = _cdiv(N, 2)
        elif tile_hw > _LANE:
            half = _round_up(_cdiv(tile_hw, 2), _LANE)
            if half < tile_hw:
                tile_hw = half
    return bn, tile_hw


def min_max_normalize(x, dim=1, eps=1e-8, *, max_block_bytes=None):
    """Min-max normalization along `dim` (specialized to dim=1 of NCHW input)."""
    assert dim == 1, "kernel specialized to dim=1 (channel axis of NCHW)"
    # TODO(synk): general `dim` support would need a moveaxis wrapper.
    N, C, H, W = x.shape
    HW = H * W
    itemsize = jnp.dtype(x.dtype).itemsize

    budget_f32, base_vmem_limit, single_tc = _hw_config()
    if max_block_bytes is not None:
        budget_f32 = int(max_block_bytes)
    force_two_steps = not single_tc

    kernel = functools.partial(_mn_kernel, eps=float(eps))
    cost = pl.CostEstimate(
        flops=int(3 * N * C * HW),
        transcendentals=0,
        bytes_accessed=int(2 * N * C * HW * itemsize),
    )

    if HW % _LANE == 0:
        # Sublane+lane-dense layout: (N, C, S, 128).  Channel reduce is a pure
        # VPU elementwise min/max over dense (ts, 128) slabs.
        S = HW // _LANE
        bn, ts = _choose_blocks_4d(N, C, S, budget_f32, force_two_steps)
        grid = (_cdiv(N, bn), _cdiv(S, ts))
        block = (bn, C, ts, _LANE)
        index_map = lambda n, s: (n, 0, s, 0)
        x_in = x.reshape(N, C, S, _LANE)
        out_shape = jax.ShapeDtypeStruct((N, C, S, _LANE), x.dtype)
    else:
        # Fallback: (N, C, HW) with a 128-lane tiled last axis; the padded
        # edge block is masked by Pallas (per-column compute -> harmless).
        bn, tile_hw = _choose_blocks_3d(N, C, HW, budget_f32, force_two_steps)
        grid = (_cdiv(N, bn), _cdiv(HW, tile_hw))
        block = (bn, C, tile_hw)
        index_map = lambda n, t: (n, 0, t)
        x_in = x.reshape(N, C, HW)
        out_shape = jax.ShapeDtypeStruct((N, C, HW), x.dtype)

    n_block_elems = 1
    for b in block:
        n_block_elems *= b
    block_f32_bytes = n_block_elems * 4
    block_io_bytes = n_block_elems * itemsize
    # 2x double-buffered input + output blocks plus ~3 blocks of f32 temps.
    vmem_needed = 4 * block_io_bytes + 3 * block_f32_bytes + (1 << 20)
    vmem_limit = max(base_vmem_limit, vmem_needed)
    # TODO(synk): if C alone is so large that a single (C, 128) column exceeds
    # the block budget, a two-pass (min/max pass + normalize pass) over a
    # C-split grid would be preferable to just raising the VMEM limit.

    out = pl.pallas_call(
        kernel,
        out_shape=out_shape,
        grid_spec=pltpu.PrefetchScalarGridSpec(
            num_scalar_prefetch=0,
            grid=grid,
            in_specs=[pl.BlockSpec(block, index_map)],
            out_specs=pl.BlockSpec(block, index_map),
        ),
        compiler_params=pltpu.CompilerParams(
            dimension_semantics=("parallel", "parallel"),
            vmem_limit_bytes=int(vmem_limit),
        ),
        cost_estimate=cost,
    )(x_in)

    return out.reshape(N, C, H, W)


def _reference(x, dim=1, eps=1e-8):
    x_min = jnp.min(x, axis=dim, keepdims=True)
    x_max = jnp.max(x, axis=dim, keepdims=True)
    return (x - x_min) / jnp.maximum(x_max - x_min, eps)


if __name__ == "__main__":
    key = jax.random.PRNGKey(0)

    # Primary shape (module-spec scale): lane-aligned -> 4D sublane-dense path.
    x = jax.random.normal(key, (2, 4, 16, 16), dtype=jnp.float32)
    out = jax.block_until_ready(min_max_normalize(x, dim=1, eps=1e-8))
    ref = _reference(x, dim=1, eps=1e-8)
    assert out.shape == x.shape and out.dtype == x.dtype
    assert jnp.allclose(out, ref, atol=1e-6, rtol=1e-6)

    # Non-divisor batch, lane-aligned HW (exercises partial batch blocks).
    x2 = jax.random.normal(jax.random.PRNGKey(1), (3, 4, 16, 24), dtype=jnp.float32)
    out2 = jax.block_until_ready(min_max_normalize(x2, dim=1, eps=1e-8))
    assert jnp.allclose(out2, _reference(x2), atol=1e-6, rtol=1e-6)

    # Unaligned H*W -> 3D fallback path with a masked edge block.
    x3 = jax.random.normal(jax.random.PRNGKey(2), (2, 4, 5, 7), dtype=jnp.float32)
    out3 = jax.block_until_ready(min_max_normalize(x3, dim=1, eps=1e-8))
    assert jnp.allclose(out3, _reference(x3), atol=1e-6, rtol=1e-6)

    # bf16 input: f32 internal compute, VMEM budget is f32-aware.
    x4 = jax.random.normal(jax.random.PRNGKey(3), (2, 8, 16, 16), dtype=jnp.bfloat16)
    out4 = jax.block_until_ready(min_max_normalize(x4, dim=1, eps=1e-8))
    ref4 = _reference(x4.astype(jnp.float32)).astype(jnp.bfloat16)
    assert out4.dtype == jnp.bfloat16
    assert jnp.allclose(out4.astype(jnp.float32), ref4.astype(jnp.float32),
                        atol=2e-2, rtol=2e-2)

    print("KERNEL_OK")
</pallas_src>

<mosaic_0001>
module attributes {stable_mosaic.version = 11 : i64} {
  func.func @_mn_kernel(%arg0: i32, %arg1: i32, %arg2: memref<1x4x2x128xf32, #tpu.memory_space<vmem>>, %arg3: memref<1x4x2x128xf32, #tpu.memory_space<vmem>>) attributes {dimension_semantics = [#tpu.dimension_semantics<parallel>, #tpu.dimension_semantics<parallel>], iteration_bounds = array<i64: 2, 1>, scalar_prefetch = 0 : i64, scratch_operands = 0 : i64, tpu.core_type = #tpu.core_type<tc>, window_params = [{transform_indices = @transform_0, window_bounds = array<i64: 1, 4, 2, 128>}, {transform_indices = @transform_1, window_bounds = array<i64: 1, 4, 2, 128>}]} {
    %c0 = arith.constant 0 : index
    %c0_0 = arith.constant 0 : index
    %c0_1 = arith.constant 0 : index
    %c0_2 = arith.constant 0 : index
    %0 = vector.load %arg2[%c0, %c0_0, %c0_1, %c0_2] : memref<1x4x2x128xf32, #tpu.memory_space<vmem>>, vector<1x4x2x128xf32>
    %cst = arith.constant dense<0x7F800000> : vector<1x2x128xf32>
    %1 = vector.multi_reduction <minimumf>, %0, %cst [1] : vector<1x4x2x128xf32> to vector<1x2x128xf32>
    %2 = vector.shape_cast %1 : vector<1x2x128xf32> to vector<1x1x2x128xf32>
    %cst_3 = arith.constant dense<0xFF800000> : vector<1x2x128xf32>
    %3 = vector.multi_reduction <maximumf>, %0, %cst_3 [1] : vector<1x4x2x128xf32> to vector<1x2x128xf32>
    %4 = vector.shape_cast %3 : vector<1x2x128xf32> to vector<1x1x2x128xf32>
    %5 = arith.subf %4, %2 : vector<1x1x2x128xf32>
    %cst_4 = arith.constant 9.99999993E-9 : f32
    %6 = vector.broadcast %cst_4 : f32 to vector<1x1x2x128xf32>
    %7 = arith.maximumf %5, %6 : vector<1x1x2x128xf32>
    %cst_5 = arith.constant 1.000000e+00 : f32
    %8 = vector.broadcast %cst_5 : f32 to vector<1x1x2x128xf32>
    %9 = arith.divf %8, %7 : vector<1x1x2x128xf32>
    %10 = vector.broadcast %2 : vector<1x1x2x128xf32> to vector<1x4x2x128xf32>
    %11 = arith.subf %0, %10 : vector<1x4x2x128xf32>
    %12 = vector.broadcast %9 : vector<1x1x2x128xf32> to vector<1x4x2x128xf32>
    %13 = arith.mulf %11, %12 : vector<1x4x2x128xf32>
    %c0_6 = arith.constant 0 : index
    %c0_7 = arith.constant 0 : index
    %c0_8 = arith.constant 0 : index
    %c0_9 = arith.constant 0 : index
    %14 = vector.load %arg3[%c0_6, %c0_7, %c0_8, %c0_9] : memref<1x4x2x128xf32, #tpu.memory_space<vmem>>, vector<1x4x2x128xf32>
    tpu.vector_store %arg3[%c0_6, %c0_7, %c0_8, %c0_9], %13 {strides = array<i32>} : memref<1x4x2x128xf32, #tpu.memory_space<vmem>>, vector<1x4x2x128xf32>,
    return
  }
  func.func @transform_0(%arg0: i32, %arg1: i32) -> (i32, i32, i32, i32) {
    %c0_i32 = arith.constant 0 : i32
    %c0_i32_0 = arith.constant 0 : i32
    %c0_i32_1 = arith.constant 0 : i32
    return %arg0, %c0_i32, %arg1, %c0_i32_0 : i32, i32, i32, i32
  }
  func.func @transform_1(%arg0: i32, %arg1: i32) -> (i32, i32, i32, i32) {
    %c0_i32 = arith.constant 0 : i32
    %c0_i32_0 = arith.constant 0 : i32
    %c0_i32_1 = arith.constant 0 : i32
    return %arg0, %c0_i32, %arg1, %c0_i32_0 : i32, i32, i32, i32
  }
}

</mosaic_0001>

<llo_original>
// kernel: tpu_custom_call.1
$region0: #{tpu_custom_call.1}
  #allocation0 [shape = 'u32[]', space=smem, size = 0x4, offset = 0x4, fixed_abs, tag = 'smem constant byte address 0x4 - core index']
  #allocation1 [shape = 'u32[72,128]{1,0:T(1,128)}', space=vmem, size = 0x9000, scoped, tag = 'internal scratch']
  %s0 = inlined_call_operand.hbm [shape: f32[2,4,2,128], index: 0, kind: input, shape index: {}]
  %s1 = inlined_call_operand.hbm [shape: f32[2,4,2,128], index: 1, kind: output, shape index: {}]
  %s2 = sld [smem:[#allocation0]]
  $region41: #{tpu_custom_call.1} parent=0
    _
  %s4 = ssub.s32 1, %s2
  %s5 = scalar_select 0, %s4, %s2
  $region1: #{tpu_custom_call.1} parent=0
    #allocation2 [shape = 'u8[8192]{0}', space=vmem, size = 0x2000, scoped, tag = 'input window, operand 0']
    #allocation3 [shape = 's32[2]{0}', space=sflag, size = 0x8, scoped, tag = 'scoped memory for tpu_custom_call.1']
    #allocation4 [shape = 's32[2]{0}', space=sflag, size = 0x8, scoped, tag = 'scoped memory for tpu_custom_call.1']
    #allocation5 [shape = 'u8[8192]{0}', space=vmem, size = 0x2000, scoped, tag = 'output window, operand 0']
    %6 = vsyncpa [#allocation3], 0
    %s7 = scalar_lea.sflag [#allocation3], 1
    %8 = vsyncpa %s7, 0
    %9 = vsyncpa [#allocation4], 0
    %s10 = scalar_lea.sflag [#allocation4], 1
    %11 = vsyncpa %s10, 0
    loop: start=0, step=1, limit=4
    $region2: #{tpu_custom_call.1} parent=1 // loop_pre_header
      _
    $region3: #{tpu_custom_call.1} parent=1 // loop_header
      %s13 = sphi 0, %s17
      %p14 = scmp.ge.s32.totalorder %s13, 4
      %s20 = sphi 0, %s32
      %s21 = sphi 0, %s28
      %s22 = sphi 0, %s20
      %s23 = sphi 0, %s21
      %s24 = sphi 0, %s22
      %s25 = sphi 0, %s23
      %s37 = sphi 0, %s39
      %s40 = sphi 0, %s37
      %s41 = sphi 0, %s40
      %s57 = sphi 0, %s41
      %s65 = sphi 0, %s67
      %s68 = sphi 0, %s65
      %s69 = sphi 0, %s68
      %s85 = sphi 0, %s69
    $region4: #{tpu_custom_call.1} parent=1 // loop_header_branch
      %16 = sbr.rel (%p14) target = $region8
    $region5: #{tpu_custom_call.1} parent=1 // loop_body
      %s18 = ssub.s32 %s13, 1
      %s19 = ssub.s32 %s13, 2
      %s26 = sadd.s32 1, %s21
      %p27 = scmp.ge.s32.totalorder %s26, 1
      %s28 = scalar_select %p27, 0, %s26
      %s29 = sadd.s32 1, %s20
      %s30 = scalar_select %p27, %s29, %s20
      %p31 = scmp.ge.s32.totalorder %s30, 2
      %s32 = scalar_select %p31, 0, %s30
      %s33 = ssub.s32 %s20, %s32
      %s34 = ssub.s32 %s21, %s28
      %s35 = sor.u32 %s33, %s34
      %p36 = scmp.eq.s32.totalorder %s35, 0
      %s38 = sadd.s32 %s37, 1
      %s39 = scalar_select %p36, %s37, %s38
      %p42 = pneg %p36
      %p43 = scmp.eq.s32.totalorder %s13, 1
      %p44 = por %p42, %p43
      %p45 = scmp.ne.s32.totalorder %s37, %s40
      %p46 = scmp.eq.s32.totalorder %s13, 0
      %p47 = por %p45, %p46
      %p48 = scmp.ne.s32.totalorder %s37, %s40
      %p49 = scmp.eq.s32.totalorder %s18, 1
      %p50 = por %p48, %p49
      %p51 = scmp.ne.s32.totalorder %s40, %s41
      %p52 = scmp.eq.s32.totalorder %s18, 0
      %p53 = por %p51, %p52
      %p54 = scmp.ne.s32.totalorder %s40, %s41
      %p55 = scmp.eq.s32.totalorder %s19, 1
      %p56 = por %p54, %p55
      %p58 = scmp.ne.s32.totalorder %s41, %s57
      %p59 = scmp.eq.s32.totalorder %s19, 0
      %p60 = por %p58, %p59
      %s61 = ssub.s32 %s20, %s32
      %s62 = ssub.s32 %s21, %s28
      %s63 = sor.u32 %s61, %s62
      %p64 = scmp.eq.s32.totalorder %s63, 0
      %s66 = sadd.s32 %s65, 1
      %s67 = scalar_select %p64, %s65, %s66
      %p70 = pneg %p64
      %p71 = scmp.eq.s32.totalorder %s13, 1
      %p72 = por %p70, %p71
      %p73 = scmp.ne.s32.totalorder %s65, %s68
      %p74 = scmp.eq.s32.totalorder %s13, 0
      %p75 = por %p73, %p74
      %p76 = scmp.ne.s32.totalorder %s65, %s68
      %p77 = scmp.eq.s32.totalorder %s18, 1
      %p78 = por %p76, %p77
      %p79 = scmp.ne.s32.totalorder %s68, %s69
      %p80 = scmp.eq.s32.totalorder %s18, 0
      %p81 = por %p79, %p80
      %p82 = scmp.ne.s32.totalorder %s68, %s69
      %p83 = scmp.eq.s32.totalorder %s19, 1
      %p84 = por %p82, %p83
      %p86 = scmp.ne.s32.totalorder %s69, %s85
      %p87 = scmp.eq.s32.totalorder %s19, 0
      %p88 = por %p86, %p87
      %p89 = scmp.le.s32.totalorder 1, %s13
      %p90 = scmp.lt.s32.totalorder %s13, 3
      %p91 = pnand %p89, %p90
      %p92 = pneg %p91
      // Predicated region
      $region9: #{tpu_custom_call.1} parent=5 // pred_check
        _
      $region10: #{tpu_custom_call.1} parent=5 // pred_check_branch
        %94 = sbr.rel (%p91) target = $region12
      $region11: #{tpu_custom_call.1} parent=5 // pred_region
        %s95 = ssub.s32 %s13, 1
      $region12: #{tpu_custom_call.1} parent=5 // pred_fallthru
        _
      %p96 = scmp.lt.s32.totalorder %s13, 2
      // Predicated region
      $region13: #{tpu_custom_call.1} parent=5 // pred_check
        %p97 = pneg %p96
      $region14: #{tpu_custom_call.1} parent=5 // pred_check_branch
        %99 = sbr.rel (%p97) target = $region16
      $region15: #{tpu_custom_call.1} parent=5 // pred_region
        // Predicated region
        $region17: #{tpu_custom_call.1} parent=15 // pred_check
          %p100 = pneg %p47
        $region18: #{tpu_custom_call.1} parent=15 // pred_check_branch
          %102 = sbr.rel (%p100) target = $region20
        $region19: #{tpu_custom_call.1} parent=15 // pred_region
          %s103 = sand.u32 %s37, 1
          %s104 = scalar_lea.sflag [#allocation3], %s103
          %s105 = sand.u32 %s37, 1
          %s106 = smul.addr %s105, 8
          %s107 = scalar_lea.vmem [#allocation2], %s106
          %109 = vsyncadd %s104, 0
          %s110 = smul.addr %s20, 4
          %s111 = sadd.s32 %s21, %s110
          %s112 = smul.addr %s111, 2
          %s113 = scalar_lea.hbm %s0, %s112
          %s114 = sshll.u32 %s113, 4
          %s115 = int_to_ptr.hbm [resolvable:$true] %s114
          %s116 = sshll.u32 %s107, 4
          %s117 = int_to_ptr.vmem [resolvable:$true] %s116
          %122 = dma.hbm_to_vmem [thread:$0]  %s115, 128, %s117, %s104, 32, 32, 2
        $region20: #{tpu_custom_call.1} parent=15 // pred_fallthru
          _
      $region16: #{tpu_custom_call.1} parent=5 // pred_fallthru
        _
      %p123 = scmp.le.s32.totalorder 1, %s13
      %p124 = scmp.lt.s32.totalorder %s13, 3
      %p125 = pnand %p123, %p124
      %p126 = pneg %p125
      // Predicated region
      $region21: #{tpu_custom_call.1} parent=5 // pred_check
        _
      $region22: #{tpu_custom_call.1} parent=5 // pred_check_branch
        %128 = sbr.rel (%p125) target = $region24
      $region23: #{tpu_custom_call.1} parent=5 // pred_region
        %s129 = ssub.s32 %s13, 1
        %s130 = sand.u32 %s40, 1
        %s131 = scalar_lea.sflag [#allocation3], %s130
        %s132 = sand.u32 %s40, 1
        %s133 = smul.addr %s132, 8
        %s134 = scalar_lea.vmem [#allocation2], %s133
        // Predicated region
        $region25: #{tpu_custom_call.1} parent=23 // pred_check
          %p135 = pneg %p53
        $region26: #{tpu_custom_call.1} parent=23 // pred_check_branch
          %137 = sbr.rel (%p135) target = $region28
        $region27: #{tpu_custom_call.1} parent=23 // pred_region
          %139 = dma.done %s131, 128
        $region28: #{tpu_custom_call.1} parent=23 // pred_fallthru
          _
        %s140 = sand.u32 %s40, 1
        %s141 = scalar_lea.sflag [#allocation3], %s140
        %s142 = sand.u32 %s40, 1
        %s143 = smul.addr %s142, 8
        %s144 = scalar_lea.vmem [#allocation2], %s143
        %p145 = pneg %p53
        %p146 = pneg %p50
        %p147 = pneg %p81
        %p148 = pneg %p78
        %s149 = sand.u32 %s68, 1
        %s150 = scalar_lea.sflag [#allocation4], %s149
        %s151 = sand.u32 %s68, 1
        %s152 = smul.addr %s151, 8
        %s153 = scalar_lea.vmem [#allocation5], %s152
        %v154 = vld [vmem:[%s134] sm:$0x3]
        %v155 = vld [vmem:[%s134 + $0x2] sm:$0x3]
        %v156 = vld [vmem:[%s134 + $0x4] sm:$0x3]
        %v157 = vld [vmem:[%s134 + $0x6] sm:$0x3]
        %vm158 = vcmask 1041408
        %v159 = vsel %vm158, %v154, inf
        %v160 = vsel %vm158, %v155, inf
        %v161 = vsel %vm158, %v156, inf
        %v162 = vsel %vm158, %v157, inf
        %v163 = vmin.f32 %v159, %v160
        %v164 = vmin.f32 %v161, %v162
        %v165 = vmin.f32 %v163, %v164
        %v166 = vsel %vm158, %v154, -inf
        %v167 = vsel %vm158, %v155, -inf
        %v168 = vsel %vm158, %v156, -inf
        %v169 = vsel %vm158, %v157, -inf
        %v170 = vmax.f32 %v166, %v167
        %v171 = vmax.f32 %v168, %v169
        %v172 = vmax.f32 %v170, %v171
        %v173 = vsub.f32 %v172, %v165
        %v174 = vmax.f32 %v173, 1e-08
        %v175 = vrcp.pop %v174
        %v176 = vmul.f32 %v174, %v175
        %v177 = vsub.f32 1.0, %v176
        %v178 = vmul.f32 %v175, %v177
        %v179 = vadd.f32 %v175, %v178
        %vm180 = vweird.f32 %v174
        %vm181 = vweird.f32 %v175
        %vm182 = vmor %vm180, %vm181
        %v183 = vsel %vm182, %v175, %v179
        %v184 = vand.u32 2147483647, %v174
        %vm185 = vcmp.eq.f32.partialorder %v184, 8.507059e+37
        %v186 = vand.u32 %v174, 2147483648
        %v187 = vor.u32 1.1754944e-38, %v186
        %v188 = vsel %vm185, %v187, %v183
        %v189 = vmul.f32 1.0, %v188
        %v190 = vsub.f32 %v154, %v165
        %v191 = vsub.f32 %v155, %v165
        %v192 = vsub.f32 %v156, %v165
        %v193 = vsub.f32 %v157, %v165
        %v194 = vmul.f32 %v190, %v189
        %v195 = vmul.f32 %v191, %v189
        %v196 = vmul.f32 %v192, %v189
        %v197 = vmul.f32 %v193, %v189
        %198 = vst [vmem:[%s153] sm:$0x3] %v194
        %199 = vst [vmem:[%s153 + $0x2] sm:$0x3] %v195
        %200 = vst [vmem:[%s153 + $0x4] sm:$0x3] %v196
        %201 = vst [vmem:[%s153 + $0x6] sm:$0x3] %v197
        %s202 = sand.u32 %s68, 1
        %s203 = scalar_lea.sflag [#allocation4], %s202
        %s204 = sand.u32 %s68, 1
        %s205 = smul.addr %s204, 8
        %s206 = scalar_lea.vmem [#allocation5], %s205
        // Predicated region
        $region29: #{tpu_custom_call.1} parent=23 // pred_check
          %p207 = pneg %p78
        $region30: #{tpu_custom_call.1} parent=23 // pred_check_branch
          %209 = sbr.rel (%p207) target = $region32
        $region31: #{tpu_custom_call.1} parent=23 // pred_region
          %211 = vsyncadd %s203, 0
          %s212 = smul.addr %s22, 4
          %s213 = sadd.s32 %s23, %s212
          %s214 = smul.addr %s213, 2
          %s215 = scalar_lea.hbm %s1, %s214
          %s216 = sshll.u32 %s206, 4
          %s217 = int_to_ptr.vmem [resolvable:$true] %s216
          %s218 = sshll.u32 %s215, 4
          %s219 = int_to_ptr.hbm [resolvable:$true] %s218
          %224 = dma.vmem_to_hbm [thread:$0]  %s217, 128, %s219, %s203, 32, 32, 2
        $region32: #{tpu_custom_call.1} parent=23 // pred_fallthru
          _
      $region24: #{tpu_custom_call.1} parent=5 // pred_fallthru
        _
      %p225 = scmp.le.s32.totalorder 2, %s13
      // Predicated region
      $region33: #{tpu_custom_call.1} parent=5 // pred_check
        %p226 = pneg %p225
      $region34: #{tpu_custom_call.1} parent=5 // pred_check_branch
        %228 = sbr.rel (%p226) target = $region36
      $region35: #{tpu_custom_call.1} parent=5 // pred_region
        %s229 = ssub.s32 %s13, 2
        // Predicated region
        $region37: #{tpu_custom_call.1} parent=35 // pred_check
          %p230 = pneg %p84
        $region38: #{tpu_custom_call.1} parent=35 // pred_check_branch
          %232 = sbr.rel (%p230) target = $region40
        $region39: #{tpu_custom_call.1} parent=35 // pred_region
          %s233 = sand.u32 %s69, 1
          %s234 = scalar_lea.sflag [#allocation4], %s233
          %s235 = sand.u32 %s69, 1
          %s236 = smul.addr %s235, 8
          %s237 = scalar_lea.vmem [#allocation5], %s236
          %239 = dma.done %s234, 128
        $region40: #{tpu_custom_call.1} parent=35 // pred_fallthru
          _
      $region36: #{tpu_custom_call.1} parent=5 // pred_fallthru
        _
    $region6: #{tpu_custom_call.1} parent=1 // loop_footer
      %s17 = sadd.s32 1, %s13
    $region7: #{tpu_custom_call.1} parent=1 // loop_footer_branch
      %12 = sbr.rel target = $region3
    $region8: #{tpu_custom_call.1} parent=1 // loop_exit
      _
    %240 = vsyncpa [#allocation3], 1
    %s241 = scalar_lea.sflag [#allocation3], 1
    %242 = vsyncpa %s241, 1
    %243 = vsyncpa [#allocation4], 1
    %s244 = scalar_lea.sflag [#allocation4], 1
    %245 = vsyncpa %s244, 1

</llo_original>
